<compile_context>
chip_gen: v5e
topology: v5e:2x2
jax: 0.10.0
libtpu: 0.0.40
codegen_flags: <defaults>
</compile_context>

<pallas_src>
import jax
import jax.numpy as jnp
from jax.experimental import pallas as pl
from jax.experimental.pallas import tpu as pltpu

LANE = 128  # TPU lane width


def _round_up(n, m):
    return ((n + m - 1) // m) * m


def _pad2d(a, rows, cols):
    return jnp.pad(a, ((0, rows - a.shape[0]), (0, cols - a.shape[1])))


def _num_tensorcores():
    # v7x has 2 TensorCores per chip; v5e/v6e have 1.
    try:
        kind = jax.devices()[0].device_kind.lower()
        if "v7" in kind:
            return 2
    except Exception:
        pass
    return 1


# ----------------------------------------------------------------------------
# Kernel
# ----------------------------------------------------------------------------
def dnn_kernel(x_ref,
               w1_ref, b1_ref,
               w2_ref, b2_ref,
               w3_ref, b3_ref,
               wo_ref, bo_ref,
               out_ref):
    # fc1 on the pre-concatenated (TB, 2F) input: a single K=2F MXU push.
    h = jnp.dot(x_ref[...], w1_ref[...], preferred_element_type=jnp.float32)
    h = jnp.maximum(h + b1_ref[...], 0.0).astype(jnp.bfloat16)      # relu(fc1)

    h = jnp.dot(h, w2_ref[...], preferred_element_type=jnp.float32) + b2_ref[...]
    h = jnp.maximum(h, 0.0).astype(jnp.bfloat16)                    # relu(fc2)

    h = jnp.dot(h, w3_ref[...], preferred_element_type=jnp.float32) + b3_ref[...]
    h = jnp.maximum(h, 0.0).astype(jnp.bfloat16)                    # relu(fc3)

    # output layer, no activation; (TB, 128) lane-dense store
    out = jnp.dot(h, wo_ref[...], preferred_element_type=jnp.float32) + bo_ref[...]
    out_ref[...] = out.astype(out_ref.dtype)


# ----------------------------------------------------------------------------
# Wrapper
# ----------------------------------------------------------------------------
def pack_params(params):
    """Zero-pad layer widths to lane multiples, cast weights to bf16."""
    (w1, b1), (w2, b2), (w3, b3), (wo, bo) = params
    k1 = w1.shape[0]                                   # 2 * n_features
    h1, h2, h3, n_out = w1.shape[1], w2.shape[1], w3.shape[1], wo.shape[1]
    H1, H2, H3, NO = (_round_up(d, LANE) for d in (h1, h2, h3, n_out))
    bf, f32 = jnp.bfloat16, jnp.float32
    packed = (
        _pad2d(w1, k1, H1).astype(bf),
        _pad2d(b1.reshape(1, -1), 1, H1).astype(f32),
        _pad2d(w2, H1, H2).astype(bf),
        _pad2d(b2.reshape(1, -1), 1, H2).astype(f32),
        _pad2d(w3, H2, H3).astype(bf),
        _pad2d(b3.reshape(1, -1), 1, H3).astype(f32),
        _pad2d(wo, H3, NO).astype(bf),
        _pad2d(bo.reshape(1, -1), 1, NO).astype(f32),
    )
    return packed, NO, n_out


def dnn_forward(x, mask, params, *, block_b_max=1024, out_dtype=jnp.float32):
    """x: (B, n_features) f32, mask: (B, n_features) bool/float."""
    B, F = x.shape
    K1 = 2 * F
    packed, NO, n_out = pack_params(params)
    H1, H2, H3 = packed[0].shape[1], packed[2].shape[1], packed[4].shape[1]

    # Batch tiling: one grid step per TensorCore (v5e/v6e -> grid=1,
    # v7x -> grid=2), capped at block_b_max rows for very large batches,
    # rounded up to a multiple of 16 for bf16 sublane packing.
    n_tc = _num_tensorcores()
    B16 = _round_up(B, 16)
    TB = min(_round_up(-(-B16 // n_tc), 16), _round_up(block_b_max, 16))
    Bp = _round_up(B, TB)

    # Single fused pad + concat + cast (mask.float() folded in) — no
    # standalone wrapper-side cast passes.
    xin = jnp.concatenate(
        [x.astype(jnp.bfloat16), mask.astype(jnp.bfloat16)], axis=1)
    xin = jnp.pad(xin, ((0, Bp - B), (0, 0)))

    flops = 2 * Bp * (K1 * H1 + H1 * H2 + H2 * H3 + H3 * NO)
    bytes_accessed = int(
        Bp * K1 * 2                                             # bf16 input
        + sum(int(p.size) * p.dtype.itemsize for p in packed)   # weights/biases
        + Bp * NO * jnp.dtype(out_dtype).itemsize)              # output

    row_spec = pl.BlockSpec((TB, K1), lambda i: (i, 0))

    def resident(arr):
        # Same block every grid step -> stays VMEM-resident, no re-DMA.
        return pl.BlockSpec(arr.shape, lambda i: (0, 0))

    out = pl.pallas_call(
        dnn_kernel,
        out_shape=jax.ShapeDtypeStruct((Bp, NO), out_dtype),
        grid=(Bp // TB,),
        in_specs=[row_spec] + [resident(p) for p in packed],
        out_specs=pl.BlockSpec((TB, NO), lambda i: (i, 0)),
        compiler_params=pltpu.CompilerParams(
            dimension_semantics=("parallel",)),       # v7x: shard batch over 2 TCs
        cost_estimate=pl.CostEstimate(
            flops=flops, transcendentals=0, bytes_accessed=bytes_accessed),
    )(xin, *packed)

    return out[:B, :n_out].astype(jnp.float32)


# ----------------------------------------------------------------------------
# Params + references
# ----------------------------------------------------------------------------
def init_params(key, n_features, h1, h2, h3, n_out):
    """Deterministic synthetic parameters (PyTorch-Linear-shaped, transposed)."""
    dims = [(2 * n_features, h1), (h1, h2), (h2, h3), (h3, n_out)]
    params = []
    for i, (fan_in, fan_out) in enumerate(dims):
        kw, kb, key = jax.random.split(jax.random.fold_in(key, i), 3)
        bound = 1.0 / jnp.sqrt(fan_in)
        w = jax.random.uniform(kw, (fan_in, fan_out), jnp.float32, -bound, bound)
        b = jax.random.uniform(kb, (1, fan_out), jnp.float32, -bound, bound)
        params.append((w, b))
    return params


def reference_forward(x, mask, params, matmul_dtype=jnp.float32):
    """Pure-JAX reference of the PyTorch forward (optionally bf16 matmuls)."""
    (w1, b1), (w2, b2), (w3, b3), (wo, bo) = params

    def mm(a, w):
        return jnp.dot(a.astype(matmul_dtype), w.astype(matmul_dtype),
                       preferred_element_type=jnp.float32)

    h = jnp.concatenate([x, mask.astype(jnp.float32)], axis=1)
    h = jnp.maximum(mm(h, w1) + b1, 0.0)
    h = jnp.maximum(mm(h, w2) + b2, 0.0)
    h = jnp.maximum(mm(h, w3) + b3, 0.0)
    return mm(h, wo) + bo


# ----------------------------------------------------------------------------
if __name__ == "__main__":
    # Hyperparameters implied by the module:
    #   n_features=16 -> fc1 in = 32; linear_layer_{1,2,3}.out_features = 64,32,32;
    #   output_layer.out_features = 4
    B, n_features = 256, 16
    h1, h2, h3, n_out = 64, 32, 32, 4

    key = jax.random.PRNGKey(0)
    kx, km, kp = jax.random.split(key, 3)

    x = jax.random.normal(kx, (B, n_features), jnp.float32)
    mask = jax.random.uniform(km, (B, n_features)) > 0.5   # bool, like torch mask

    params = init_params(kp, n_features, h1, h2, h3, n_out)

    out = jax.block_until_ready(jax.jit(dnn_forward)(x, mask, params))

    # Precision-matched reference (bf16 matmuls, f32 accumulate) and a loose
    # check against the pure-f32 PyTorch-equivalent math.
    ref_bf16 = reference_forward(x, mask, params, matmul_dtype=jnp.bfloat16)
    ref_f32 = reference_forward(x, mask, params, matmul_dtype=jnp.float32)

    assert out.shape == (B, n_out)
    assert jnp.allclose(out, ref_bf16, atol=2e-3, rtol=2e-3), \
        "mismatch vs bf16-matched reference"
    assert jnp.allclose(out, ref_f32, atol=1e-1, rtol=1e-1), \
        "mismatch vs f32 reference"

    print("KERNEL_OK")
</pallas_src>

<mosaic_0001>
module attributes {stable_mosaic.version = 11 : i64} {
  func.func @dnn_kernel(%arg0: i32, %arg1: memref<256x32xbf16, #tpu.memory_space<vmem>>, %arg2: memref<32x128xbf16, #tpu.memory_space<vmem>>, %arg3: memref<1x128xf32, #tpu.memory_space<vmem>>, %arg4: memref<128x128xbf16, #tpu.memory_space<vmem>>, %arg5: memref<1x128xf32, #tpu.memory_space<vmem>>, %arg6: memref<128x128xbf16, #tpu.memory_space<vmem>>, %arg7: memref<1x128xf32, #tpu.memory_space<vmem>>, %arg8: memref<128x128xbf16, #tpu.memory_space<vmem>>, %arg9: memref<1x128xf32, #tpu.memory_space<vmem>>, %arg10: memref<256x128xf32, #tpu.memory_space<vmem>>) attributes {dimension_semantics = [#tpu.dimension_semantics<parallel>], iteration_bounds = array<i64: 1>, scalar_prefetch = 0 : i64, scratch_operands = 0 : i64, tpu.core_type = #tpu.core_type<tc>, window_params = [{transform_indices = @transform_0, window_bounds = array<i64: 256, 32>}, {pipeline_mode = #tpu.pipeline_mode<synchronous>, transform_indices = @transform_1, window_bounds = array<i64: 32, 128>}, {pipeline_mode = #tpu.pipeline_mode<synchronous>, transform_indices = @transform_2, window_bounds = array<i64: 1, 128>}, {pipeline_mode = #tpu.pipeline_mode<synchronous>, transform_indices = @transform_3, window_bounds = array<i64: 128, 128>}, {pipeline_mode = #tpu.pipeline_mode<synchronous>, transform_indices = @transform_4, window_bounds = array<i64: 1, 128>}, {pipeline_mode = #tpu.pipeline_mode<synchronous>, transform_indices = @transform_5, window_bounds = array<i64: 128, 128>}, {pipeline_mode = #tpu.pipeline_mode<synchronous>, transform_indices = @transform_6, window_bounds = array<i64: 1, 128>}, {pipeline_mode = #tpu.pipeline_mode<synchronous>, transform_indices = @transform_7, window_bounds = array<i64: 128, 128>}, {pipeline_mode = #tpu.pipeline_mode<synchronous>, transform_indices = @transform_8, window_bounds = array<i64: 1, 128>}, {transform_indices = @transform_9, window_bounds = array<i64: 256, 128>}]} {
    %c0 = arith.constant 0 : index
    %c0_0 = arith.constant 0 : index
    %0 = vector.load %arg1[%c0, %c0_0] : memref<256x32xbf16, #tpu.memory_space<vmem>>, vector<256x32xbf16>
    %c0_1 = arith.constant 0 : index
    %c0_2 = arith.constant 0 : index
    %1 = vector.load %arg2[%c0_1, %c0_2] : memref<32x128xbf16, #tpu.memory_space<vmem>>, vector<32x128xbf16>
    %cst = arith.constant dense<0.000000e+00> : vector<256x128xf32>
    %2 = tpu.matmul %0, %1, %cst {dimension_numbers = #tpu.dot_dimension_numbers<[1], [0], [0], [1], [0, 0, 1, 1], [], []>} : vector<256x32xbf16>, vector<32x128xbf16>, vector<256x128xf32> -> vector<256x128xf32>
    %c0_3 = arith.constant 0 : index
    %c0_4 = arith.constant 0 : index
    %3 = vector.load %arg3[%c0_3, %c0_4] : memref<1x128xf32, #tpu.memory_space<vmem>>, vector<1x128xf32>
    %4 = vector.broadcast %3 : vector<1x128xf32> to vector<256x128xf32>
    %5 = arith.addf %2, %4 : vector<256x128xf32>
    %cst_5 = arith.constant 0.000000e+00 : f32
    %6 = vector.broadcast %cst_5 : f32 to vector<256x128xf32>
    %7 = arith.maximumf %5, %6 : vector<256x128xf32>
    %8 = arith.truncf %7 : vector<256x128xf32> to vector<256x128xbf16>
    %c0_6 = arith.constant 0 : index
    %c0_7 = arith.constant 0 : index
    %9 = vector.load %arg4[%c0_6, %c0_7] : memref<128x128xbf16, #tpu.memory_space<vmem>>, vector<128x128xbf16>
    %cst_8 = arith.constant dense<0.000000e+00> : vector<256x128xf32>
    %10 = tpu.matmul %8, %9, %cst_8 {dimension_numbers = #tpu.dot_dimension_numbers<[1], [0], [0], [1], [0, 0, 1, 1], [], []>} : vector<256x128xbf16>, vector<128x128xbf16>, vector<256x128xf32> -> vector<256x128xf32>
    %c0_9 = arith.constant 0 : index
    %c0_10 = arith.constant 0 : index
    %11 = vector.load %arg5[%c0_9, %c0_10] : memref<1x128xf32, #tpu.memory_space<vmem>>, vector<1x128xf32>
    %12 = vector.broadcast %11 : vector<1x128xf32> to vector<256x128xf32>
    %13 = arith.addf %10, %12 : vector<256x128xf32>
    %cst_11 = arith.constant 0.000000e+00 : f32
    %14 = vector.broadcast %cst_11 : f32 to vector<256x128xf32>
    %15 = arith.maximumf %13, %14 : vector<256x128xf32>
    %16 = arith.truncf %15 : vector<256x128xf32> to vector<256x128xbf16>
    %c0_12 = arith.constant 0 : index
    %c0_13 = arith.constant 0 : index
    %17 = vector.load %arg6[%c0_12, %c0_13] : memref<128x128xbf16, #tpu.memory_space<vmem>>, vector<128x128xbf16>
    %cst_14 = arith.constant dense<0.000000e+00> : vector<256x128xf32>
    %18 = tpu.matmul %16, %17, %cst_14 {dimension_numbers = #tpu.dot_dimension_numbers<[1], [0], [0], [1], [0, 0, 1, 1], [], []>} : vector<256x128xbf16>, vector<128x128xbf16>, vector<256x128xf32> -> vector<256x128xf32>
    %c0_15 = arith.constant 0 : index
    %c0_16 = arith.constant 0 : index
    %19 = vector.load %arg7[%c0_15, %c0_16] : memref<1x128xf32, #tpu.memory_space<vmem>>, vector<1x128xf32>
    %20 = vector.broadcast %19 : vector<1x128xf32> to vector<256x128xf32>
    %21 = arith.addf %18, %20 : vector<256x128xf32>
    %cst_17 = arith.constant 0.000000e+00 : f32
    %22 = vector.broadcast %cst_17 : f32 to vector<256x128xf32>
    %23 = arith.maximumf %21, %22 : vector<256x128xf32>
    %24 = arith.truncf %23 : vector<256x128xf32> to vector<256x128xbf16>
    %c0_18 = arith.constant 0 : index
    %c0_19 = arith.constant 0 : index
    %25 = vector.load %arg8[%c0_18, %c0_19] : memref<128x128xbf16, #tpu.memory_space<vmem>>, vector<128x128xbf16>
    %cst_20 = arith.constant dense<0.000000e+00> : vector<256x128xf32>
    %26 = tpu.matmul %24, %25, %cst_20 {dimension_numbers = #tpu.dot_dimension_numbers<[1], [0], [0], [1], [0, 0, 1, 1], [], []>} : vector<256x128xbf16>, vector<128x128xbf16>, vector<256x128xf32> -> vector<256x128xf32>
    %c0_21 = arith.constant 0 : index
    %c0_22 = arith.constant 0 : index
    %27 = vector.load %arg9[%c0_21, %c0_22] : memref<1x128xf32, #tpu.memory_space<vmem>>, vector<1x128xf32>
    %28 = vector.broadcast %27 : vector<1x128xf32> to vector<256x128xf32>
    %29 = arith.addf %26, %28 : vector<256x128xf32>
    %c0_23 = arith.constant 0 : index
    %c0_24 = arith.constant 0 : index
    %30 = vector.load %arg10[%c0_23, %c0_24] : memref<256x128xf32, #tpu.memory_space<vmem>>, vector<256x128xf32>
    tpu.vector_store %arg10[%c0_23, %c0_24], %29 {strides = array<i32>} : memref<256x128xf32, #tpu.memory_space<vmem>>, vector<256x128xf32>,
    return
  }
  func.func @transform_0(%arg0: i32) -> (i32, i32) {
    %c0_i32 = arith.constant 0 : i32
    %c0_i32_0 = arith.constant 0 : i32
    return %arg0, %c0_i32 : i32, i32
  }
  func.func @transform_1(%arg0: i32) -> (i32, i32) {
    %c0_i32 = arith.constant 0 : i32
    %c0_i32_0 = arith.constant 0 : i32
    %c0_i32_1 = arith.constant 0 : i32
    return %c0_i32, %c0_i32_0 : i32, i32
  }
  func.func @transform_2(%arg0: i32) -> (i32, i32) {
    %c0_i32 = arith.constant 0 : i32
    %c0_i32_0 = arith.constant 0 : i32
    %c0_i32_1 = arith.constant 0 : i32
    return %c0_i32, %c0_i32_0 : i32, i32
  }
  func.func @transform_3(%arg0: i32) -> (i32, i32) {
    %c0_i32 = arith.constant 0 : i32
    %c0_i32_0 = arith.constant 0 : i32
    %c0_i32_1 = arith.constant 0 : i32
    return %c0_i32, %c0_i32_0 : i32, i32
  }
  func.func @transform_4(%arg0: i32) -> (i32, i32) {
    %c0_i32 = arith.constant 0 : i32
    %c0_i32_0 = arith.constant 0 : i32
    %c0_i32_1 = arith.constant 0 : i32
    return %c0_i32, %c0_i32_0 : i32, i32
  }
  func.func @transform_5(%arg0: i32) -> (i32, i32) {
    %c0_i32 = arith.constant 0 : i32
    %c0_i32_0 = arith.constant 0 : i32
    %c0_i32_1 = arith.constant 0 : i32
    return %c0_i32, %c0_i32_0 : i32, i32
  }
  func.func @transform_6(%arg0: i32) -> (i32, i32) {
    %c0_i32 = arith.constant 0 : i32
    %c0_i32_0 = arith.constant 0 : i32
    %c0_i32_1 = arith.constant 0 : i32
    return %c0_i32, %c0_i32_0 : i32, i32
  }
  func.func @transform_7(%arg0: i32) -> (i32, i32) {
    %c0_i32 = arith.constant 0 : i32
    %c0_i32_0 = arith.constant 0 : i32
    %c0_i32_1 = arith.constant 0 : i32
    return %c0_i32, %c0_i32_0 : i32, i32
  }
  func.func @transform_8(%arg0: i32) -> (i32, i32) {
    %c0_i32 = arith.constant 0 : i32
    %c0_i32_0 = arith.constant 0 : i32
    %c0_i32_1 = arith.constant 0 : i32
    return %c0_i32, %c0_i32_0 : i32, i32
  }
  func.func @transform_9(%arg0: i32) -> (i32, i32) {
    %c0_i32 = arith.constant 0 : i32
    %c0_i32_0 = arith.constant 0 : i32
    return %arg0, %c0_i32 : i32, i32
  }
}

</mosaic_0001>

<llo_original>
// kernel: dnn_forward.1
$region0: #{dnn_forward.1}
  #allocation0 [shape = 'u32[]', space=smem, size = 0x4, offset = 0x4, fixed_abs, tag = 'smem constant byte address 0x4 - core index']
  #allocation1 [shape = 'u32[72,128]{1,0:T(1,128)}', space=vmem, size = 0x9000, scoped, tag = 'internal scratch']
  %s0 = inlined_call_operand.vmem [shape: bf16[256,32], index: 0, kind: input, shape index: {}]
  %s1 = inlined_call_operand.vmem [shape: bf16[32,128], index: 1, kind: input, shape index: {}]
  %s2 = inlined_call_operand.vmem [shape: f32[1,128], index: 2, kind: input, shape index: {}]
  %s3 = inlined_call_operand.vmem [shape: bf16[128,128], index: 3, kind: input, shape index: {}]
  %s4 = inlined_call_operand.vmem [shape: f32[1,128], index: 4, kind: input, shape index: {}]
  %s5 = inlined_call_operand.vmem [shape: bf16[128,128], index: 5, kind: input, shape index: {}]
  %s6 = inlined_call_operand.vmem [shape: f32[1,128], index: 6, kind: input, shape index: {}]
  %s7 = inlined_call_operand.vmem [shape: bf16[128,128], index: 7, kind: input, shape index: {}]
  %s8 = inlined_call_operand.vmem [shape: f32[1,128], index: 8, kind: input, shape index: {}]
  %s9 = inlined_call_operand.vmem [shape: f32[256,128], index: 9, kind: output, shape index: {}]
  %s10 = sld [smem:[#allocation0]]
  $region46: #{dnn_forward.1} parent=0
    _
  %s12 = ssub.s32 1, %s10
  %s13 = scalar_select 0, %s12, %s10
  // Predicated region
  $region2: #{dnn_forward.1} parent=0 // pred_check
    _
  $region3: #{dnn_forward.1} parent=0 // pred_check_branch
    %15 = sbr.rel (0) target = $region5
  $region4: #{dnn_forward.1} parent=0 // pred_region
    _
  $region5: #{dnn_forward.1} parent=0 // pred_fallthru
    _
  // Predicated region
  $region6: #{dnn_forward.1} parent=0 // pred_check
    _
  $region7: #{dnn_forward.1} parent=0 // pred_check_branch
    %17 = sbr.rel (0) target = $region9
  $region8: #{dnn_forward.1} parent=0 // pred_region
    _
  $region9: #{dnn_forward.1} parent=0 // pred_fallthru
    _
  // Predicated region
  $region10: #{dnn_forward.1} parent=0 // pred_check
    _
  $region11: #{dnn_forward.1} parent=0 // pred_check_branch
    %19 = sbr.rel (0) target = $region13
  $region12: #{dnn_forward.1} parent=0 // pred_region
    _
  $region13: #{dnn_forward.1} parent=0 // pred_fallthru
    _
  // Predicated region
  $region14: #{dnn_forward.1} parent=0 // pred_check
    _
  $region15: #{dnn_forward.1} parent=0 // pred_check_branch
    %21 = sbr.rel (0) target = $region17
  $region16: #{dnn_forward.1} parent=0 // pred_region
    _
  $region17: #{dnn_forward.1} parent=0 // pred_fallthru
    _
  // Predicated region
  $region18: #{dnn_forward.1} parent=0 // pred_check
    _
  $region19: #{dnn_forward.1} parent=0 // pred_check_branch
    %23 = sbr.rel (0) target = $region21
  $region20: #{dnn_forward.1} parent=0 // pred_region
    _
  $region21: #{dnn_forward.1} parent=0 // pred_fallthru
    _
  // Predicated region
  $region22: #{dnn_forward.1} parent=0 // pred_check
    _
  $region23: #{dnn_forward.1} parent=0 // pred_check_branch
    %25 = sbr.rel (0) target = $region25
  $region24: #{dnn_forward.1} parent=0 // pred_region
    _
  $region25: #{dnn_forward.1} parent=0 // pred_fallthru
    _
  // Predicated region
  $region26: #{dnn_forward.1} parent=0 // pred_check
    _
  $region27: #{dnn_forward.1} parent=0 // pred_check_branch
    %27 = sbr.rel (0) target = $region29
  $region28: #{dnn_forward.1} parent=0 // pred_region
    _
  $region29: #{dnn_forward.1} parent=0 // pred_fallthru
    _
  // Predicated region
  $region30: #{dnn_forward.1} parent=0 // pred_check
    _
  $region31: #{dnn_forward.1} parent=0 // pred_check_branch
    %29 = sbr.rel (0) target = $region33
  $region32: #{dnn_forward.1} parent=0 // pred_region
    _
  $region33: #{dnn_forward.1} parent=0 // pred_fallthru
    _
  // Predicated region
  $region34: #{dnn_forward.1} parent=0 // pred_check
    _
  $region35: #{dnn_forward.1} parent=0 // pred_check_branch
    %31 = sbr.rel (0) target = $region37
  $region36: #{dnn_forward.1} parent=0 // pred_region
    _
  $region37: #{dnn_forward.1} parent=0 // pred_fallthru
    _
  %v33 = vld [vmem:[%s0] sm:$0xf]
  %v34 = vld [vmem:[%s0 + $0x4] sm:$0xf]
  %v35 = vld [vmem:[%s0 + $0x8] sm:$0xf]
  %v36 = vld [vmem:[%s0 + $0xc] sm:$0xf]
  %v37 = vld [vmem:[%s0 + $0x10] sm:$0xf]
  %v38 = vld [vmem:[%s0 + $0x14] sm:$0xf]
  %v39 = vld [vmem:[%s0 + $0x18] sm:$0xf]
  %v40 = vld [vmem:[%s0 + $0x1c] sm:$0xf]
  %v41 = vld [vmem:[%s0 + $0x20] sm:$0xf]
  %v42 = vld [vmem:[%s0 + $0x24] sm:$0xf]
  %v43 = vld [vmem:[%s0 + $0x28] sm:$0xf]
  %v44 = vld [vmem:[%s0 + $0x2c] sm:$0xf]
  %v45 = vld [vmem:[%s0 + $0x30] sm:$0xf]
  %v46 = vld [vmem:[%s0 + $0x34] sm:$0xf]
  %v47 = vld [vmem:[%s0 + $0x38] sm:$0xf]
  %v48 = vld [vmem:[%s0 + $0x3c] sm:$0xf]
  %v49 = vld [vmem:[%s0 + $0x40] sm:$0xf]
  %v50 = vld [vmem:[%s0 + $0x44] sm:$0xf]
  %v51 = vld [vmem:[%s0 + $0x48] sm:$0xf]
  %v52 = vld [vmem:[%s0 + $0x4c] sm:$0xf]
  %v53 = vld [vmem:[%s0 + $0x50] sm:$0xf]
  %v54 = vld [vmem:[%s0 + $0x54] sm:$0xf]
  %v55 = vld [vmem:[%s0 + $0x58] sm:$0xf]
  %v56 = vld [vmem:[%s0 + $0x5c] sm:$0xf]
  %v57 = vld [vmem:[%s0 + $0x60] sm:$0xf]
  %v58 = vld [vmem:[%s0 + $0x64] sm:$0xf]
  %v59 = vld [vmem:[%s0 + $0x68] sm:$0xf]
  %v60 = vld [vmem:[%s0 + $0x6c] sm:$0xf]
  %v61 = vld [vmem:[%s0 + $0x70] sm:$0xf]
  %v62 = vld [vmem:[%s0 + $0x74] sm:$0xf]
  %v63 = vld [vmem:[%s0 + $0x78] sm:$0xf]
  %v64 = vld [vmem:[%s0 + $0x7c] sm:$0xf]
  %v65 = vld [vmem:[%s1] sm:$0xf]
  %v66 = vld [vmem:[%s1 + $0x4] sm:$0xf]
  %v67 = vld [vmem:[%s1 + $0x8] sm:$0xf]
  %v68 = vld [vmem:[%s1 + $0xc] sm:$0xf]
  %v69 = vld [vmem:[%s2] sm:$0x1]
  %v71 = vperm.slane %v69, 0
  %v105 = vunpack.c.l.b16 %v33
  %v106 = vunpack.c.l.b16 %v34
  %v107 = vunpack.c.l.b16 %v35
  %v108 = vunpack.c.l.b16 %v36
  %v109 = vunpack.c.l.b16 %v37
  %v110 = vunpack.c.l.b16 %v38
  %v111 = vunpack.c.l.b16 %v39
  %v112 = vunpack.c.l.b16 %v40
  %v113 = vunpack.c.l.b16 %v41
  %v114 = vunpack.c.l.b16 %v42
  %v115 = vunpack.c.l.b16 %v43
  %v116 = vunpack.c.l.b16 %v44
  %v117 = vunpack.c.l.b16 %v45
  %v118 = vunpack.c.l.b16 %v46
  %v119 = vunpack.c.l.b16 %v47
  %v120 = vunpack.c.l.b16 %v48
  %v121 = vunpack.c.l.b16 %v49
  %v122 = vunpack.c.l.b16 %v50
  %v123 = vunpack.c.l.b16 %v51
  %v124 = vunpack.c.l.b16 %v52
  %v125 = vunpack.c.l.b16 %v53
  %v126 = vunpack.c.l.b16 %v54
  %v127 = vunpack.c.l.b16 %v55
  %v128 = vunpack.c.l.b16 %v56
  %v129 = vunpack.c.l.b16 %v57
  %v130 = vunpack.c.l.b16 %v58
  %v131 = vunpack.c.l.b16 %v59
  %v132 = vunpack.c.l.b16 %v60
  %v133 = vunpack.c.l.b16 %v61
  %v134 = vunpack.c.l.b16 %v62
  %v135 = vunpack.c.l.b16 %v63
  %v136 = vunpack.c.l.b16 %v64
  %v137 = vpack.c.b16 %v106, %v105
  %v138 = vpack.c.b16 %v108, %v107
  %v139 = vpack.c.b16 %v110, %v109
  %v140 = vpack.c.b16 %v112, %v111
  %v141 = vpack.c.b16 %v114, %v113
  %v142 = vpack.c.b16 %v116, %v115
  %v143 = vpack.c.b16 %v118, %v117
  %v144 = vpack.c.b16 %v120, %v119
  %v145 = vpack.c.b16 %v122, %v121
  %v146 = vpack.c.b16 %v124, %v123
  %v147 = vpack.c.b16 %v126, %v125
  %v148 = vpack.c.b16 %v128, %v127
  %v149 = vpack.c.b16 %v130, %v129
  %v150 = vpack.c.b16 %v132, %v131
  %v151 = vpack.c.b16 %v134, %v133
  %v152 = vpack.c.b16 %v136, %v135
  %v157 = vunpack.c.l.b16 %v65
  %v158 = vunpack.c.l.b16 %v66
  %v159 = vunpack.c.l.b16 %v67
  %v160 = vunpack.c.l.b16 %v68
  %v161 = vpack.c.b16 %v158, %v157
  %v162 = vpack.c.b16 %v160, %v159
  %vm165 = vcmask 261120
  %v167 = vsel %vm165, %v137, 0
  %v170 = vsel %vm165, %v138, 0
  %v173 = vsel %vm165, %v139, 0
  %v176 = vsel %vm165, %v140, 0
  %v179 = vsel %vm165, %v141, 0
  %v182 = vsel %vm165, %v142, 0
  %v185 = vsel %vm165, %v143, 0
  %v188 = vsel %vm165, %v144, 0
  %v191 = vsel %vm165, %v145, 0
  %v194 = vsel %vm165, %v146, 0
  %v197 = vsel %vm165, %v147, 0
  %v200 = vsel %vm165, %v148, 0
  %v203 = vsel %vm165, %v149, 0
  %v206 = vsel %vm165, %v150, 0
  %v209 = vsel %vm165, %v151, 0
  %v212 = vsel %vm165, %v152, 0
  %214 = vmatpush.bf16.msra.mxu0 0
  %215 = vmatpush.bf16.msra.mxu0 0
  %216 = vmatpush.bf16.msra.mxu0 0
  %217 = vmatpush.bf16.msra.mxu0 0
  %218 = vmatpush.bf16.msra.mxu0 0
  %219 = vmatpush.bf16.msra.mxu0 0
  %220 = vmatpush.bf16.msra.mxu0 %v162
  %221 = vmatpush.bf16.msra.mxu0 %v161
  %222 = vmatmul.bf16.gmra.mxu0 %v167
  %v223 = vpop.f32.mrf.mxu0
  %v224 = vadd.f32 %v71, %v223
  %v225 = vpop.f32.mrf.mxu0
  %v226 = vadd.f32 %v71, %v225
  %227 = vmatmul.bf16.gmra.mxu0 %v170
  %v228 = vpop.f32.mrf.mxu0
  %v229 = vadd.f32 %v71, %v228
  %v230 = vpop.f32.mrf.mxu0
  %v231 = vadd.f32 %v71, %v230
  %232 = vmatmul.bf16.gmra.mxu0 %v173
  %v233 = vpop.f32.mrf.mxu0
  %v234 = vadd.f32 %v71, %v233
  %v235 = vpop.f32.mrf.mxu0
  %v236 = vadd.f32 %v71, %v235
  %237 = vmatmul.bf16.gmra.mxu0 %v176
  %v238 = vpop.f32.mrf.mxu0
  %v239 = vadd.f32 %v71, %v238
  %v240 = vpop.f32.mrf.mxu0
  %v241 = vadd.f32 %v71, %v240
  %242 = vmatmul.bf16.gmra.mxu0 %v179
  %v243 = vpop.f32.mrf.mxu0
  %v244 = vadd.f32 %v71, %v243
  %v245 = vpop.f32.mrf.mxu0
  %v246 = vadd.f32 %v71, %v245
  %247 = vmatmul.bf16.gmra.mxu0 %v182
  %v248 = vpop.f32.mrf.mxu0
  %v249 = vadd.f32 %v71, %v248
  %v250 = vpop.f32.mrf.mxu0
  %v251 = vadd.f32 %v71, %v250
  %252 = vmatmul.bf16.gmra.mxu0 %v185
  %v253 = vpop.f32.mrf.mxu0
  %v254 = vadd.f32 %v71, %v253
  %v255 = vpop.f32.mrf.mxu0
  %v256 = vadd.f32 %v71, %v255
  %257 = vmatmul.bf16.gmra.mxu0 %v188
  %v258 = vpop.f32.mrf.mxu0
  %v259 = vadd.f32 %v71, %v258
  %v260 = vpop.f32.mrf.mxu0
  %v261 = vadd.f32 %v71, %v260
  %262 = vmatmul.bf16.gmra.mxu0 %v191
  %v263 = vpop.f32.mrf.mxu0
  %v264 = vadd.f32 %v71, %v263
  %v265 = vpop.f32.mrf.mxu0
  %v266 = vadd.f32 %v71, %v265
  %267 = vmatmul.bf16.gmra.mxu0 %v194
  %v268 = vpop.f32.mrf.mxu0
  %v269 = vadd.f32 %v71, %v268
  %v270 = vpop.f32.mrf.mxu0
  %v271 = vadd.f32 %v71, %v270
  %272 = vmatmul.bf16.gmra.mxu0 %v197
  %v273 = vpop.f32.mrf.mxu0
  %v274 = vadd.f32 %v71, %v273
  %v275 = vpop.f32.mrf.mxu0
  %v276 = vadd.f32 %v71, %v275
  %277 = vmatmul.bf16.gmra.mxu0 %v200
  %v278 = vpop.f32.mrf.mxu0
  %v279 = vadd.f32 %v71, %v278
  %v280 = vpop.f32.mrf.mxu0
  %v281 = vadd.f32 %v71, %v280
  %282 = vmatmul.bf16.gmra.mxu0 %v203
  %v283 = vpop.f32.mrf.mxu0
  %v284 = vadd.f32 %v71, %v283
  %v285 = vpop.f32.mrf.mxu0
  %v286 = vadd.f32 %v71, %v285
  %287 = vmatmul.bf16.gmra.mxu0 %v206
  %v288 = vpop.f32.mrf.mxu0
  %v289 = vadd.f32 %v71, %v288
  %v290 = vpop.f32.mrf.mxu0
  %v291 = vadd.f32 %v71, %v290
  %292 = vmatmul.bf16.gmra.mxu0 %v209
  %v293 = vpop.f32.mrf.mxu0
  %v294 = vadd.f32 %v71, %v293
  %v295 = vpop.f32.mrf.mxu0
  %v296 = vadd.f32 %v71, %v295
  %297 = vmatmul.bf16.gmra.mxu0 %v212
  %v298 = vpop.f32.mrf.mxu0
  %v299 = vadd.f32 %v71, %v298
  %v300 = vpop.f32.mrf.mxu0
  %v301 = vadd.f32 %v71, %v300
  %302 = vdwg.mxu0
  %v303 = vmax.f32 %v224, 0.0
  %v304 = vmax.f32 %v226, 0.0
  %v305 = vmax.f32 %v229, 0.0
  %v306 = vmax.f32 %v231, 0.0
  %v307 = vmax.f32 %v234, 0.0
  %v308 = vmax.f32 %v236, 0.0
  %v309 = vmax.f32 %v239, 0.0
  %v310 = vmax.f32 %v241, 0.0
  %v311 = vmax.f32 %v244, 0.0
  %v312 = vmax.f32 %v246, 0.0
  %v313 = vmax.f32 %v249, 0.0
  %v314 = vmax.f32 %v251, 0.0
  %v315 = vmax.f32 %v254, 0.0
  %v316 = vmax.f32 %v256, 0.0
  %v317 = vmax.f32 %v259, 0.0
  %v318 = vmax.f32 %v261, 0.0
  %v319 = vmax.f32 %v264, 0.0
  %v320 = vmax.f32 %v266, 0.0
  %v321 = vmax.f32 %v269, 0.0
  %v322 = vmax.f32 %v271, 0.0
  %v323 = vmax.f32 %v274, 0.0
  %v324 = vmax.f32 %v276, 0.0
  %v325 = vmax.f32 %v279, 0.0
  %v326 = vmax.f32 %v281, 0.0
  %v327 = vmax.f32 %v284, 0.0
  %v328 = vmax.f32 %v286, 0.0
  %v329 = vmax.f32 %v289, 0.0
  %v330 = vmax.f32 %v291, 0.0
  %v331 = vmax.f32 %v294, 0.0
  %v332 = vmax.f32 %v296, 0.0
  %v333 = vmax.f32 %v299, 0.0
  %v334 = vmax.f32 %v301, 0.0
  %v335 = vpack.c.bf16 %v304, %v303
  %v336 = vpack.c.bf16 %v306, %v305
  %v337 = vpack.c.bf16 %v308, %v307
  %v338 = vpack.c.bf16 %v310, %v309
  %v339 = vpack.c.bf16 %v312, %v311
  %v340 = vpack.c.bf16 %v314, %v313
  %v341 = vpack.c.bf16 %v316, %v315
  %v342 = vpack.c.bf16 %v318, %v317
  %v343 = vpack.c.bf16 %v320, %v319
  %v344 = vpack.c.bf16 %v322, %v321
  %v345 = vpack.c.bf16 %v324, %v323
  %v346 = vpack.c.bf16 %v326, %v325
  %v347 = vpack.c.bf16 %v328, %v327
  %v348 = vpack.c.bf16 %v330, %v329
  %v349 = vpack.c.bf16 %v332, %v331
  %v350 = vpack.c.bf16 %v334, %v333
  %v351 = vld [vmem:[%s3] sm:$0xf]
  %v352 = vld [vmem:[%s3 + $0x4] sm:$0xf]
  %v353 = vld [vmem:[%s3 + $0x8] sm:$0xf]
  %v354 = vld [vmem:[%s3 + $0xc] sm:$0xf]
  %v355 = vld [vmem:[%s3 + $0x10] sm:$0xf]
  %v356 = vld [vmem:[%s3 + $0x14] sm:$0xf]
  %v357 = vld [vmem:[%s3 + $0x18] sm:$0xf]
  %v358 = vld [vmem:[%s3 + $0x1c] sm:$0xf]
  %v359 = vld [vmem:[%s3 + $0x20] sm:$0xf]
  %v360 = vld [vmem:[%s3 + $0x24] sm:$0xf]
  %v361 = vld [vmem:[%s3 + $0x28] sm:$0xf]
  %v362 = vld [vmem:[%s3 + $0x2c] sm:$0xf]
  %v363 = vld [vmem:[%s3 + $0x30] sm:$0xf]
  %v364 = vld [vmem:[%s3 + $0x34] sm:$0xf]
  %v365 = vld [vmem:[%s3 + $0x38] sm:$0xf]
  %v366 = vld [vmem:[%s3 + $0x3c] sm:$0xf]
  %v367 = vld [vmem:[%s4] sm:$0x1]
  %v369 = vperm.slane %v367, 0
  %v387 = vunpack.c.l.b16 %v351
  %v388 = vunpack.c.l.b16 %v352
  %v389 = vunpack.c.l.b16 %v353
  %v390 = vunpack.c.l.b16 %v354
  %v391 = vunpack.c.l.b16 %v355
  %v392 = vunpack.c.l.b16 %v356
  %v393 = vunpack.c.l.b16 %v357
  %v394 = vunpack.c.l.b16 %v358
  %v395 = vunpack.c.l.b16 %v359
  %v396 = vunpack.c.l.b16 %v360
  %v397 = vunpack.c.l.b16 %v361
  %v398 = vunpack.c.l.b16 %v362
  %v399 = vunpack.c.l.b16 %v363
  %v400 = vunpack.c.l.b16 %v364
  %v401 = vunpack.c.l.b16 %v365
  %v402 = vunpack.c.l.b16 %v366
  %v403 = vpack.c.b16 %v388, %v387
  %v404 = vpack.c.b16 %v390, %v389
  %v405 = vpack.c.b16 %v392, %v391
  %v406 = vpack.c.b16 %v394, %v393
  %v407 = vpack.c.b16 %v396, %v395
  %v408 = vpack.c.b16 %v398, %v397
  %v409 = vpack.c.b16 %v400, %v399
  %v410 = vpack.c.b16 %v402, %v401
  %419 = vmatpush.bf16.msra.mxu0 %v410
  %420 = vmatpush.bf16.msra.mxu0 %v409
  %421 = vmatpush.bf16.msra.mxu0 %v408
  %422 = vmatpush.bf16.msra.mxu0 %v407
  %423 = vmatpush.bf16.msra.mxu0 %v406
  %424 = vmatpush.bf16.msra.mxu0 %v405
  %425 = vmatpush.bf16.msra.mxu0 %v404
  %426 = vmatpush.bf16.msra.mxu0 %v403
  %427 = vmatmul.bf16.gmra.mxu0 %v335
  %v428 = vpop.f32.mrf.mxu0
  %v429 = vadd.f32 %v369, %v428
  %v430 = vpop.f32.mrf.mxu0
  %v431 = vadd.f32 %v369, %v430
  %432 = vmatmul.bf16.gmra.mxu0 %v336
  %v433 = vpop.f32.mrf.mxu0
  %v434 = vadd.f32 %v369, %v433
  %v435 = vpop.f32.mrf.mxu0
  %v436 = vadd.f32 %v369, %v435
  %437 = vmatmul.bf16.gmra.mxu0 %v337
  %v438 = vpop.f32.mrf.mxu0
  %v439 = vadd.f32 %v369, %v438
  %v440 = vpop.f32.mrf.mxu0
  %v441 = vadd.f32 %v369, %v440
  %442 = vmatmul.bf16.gmra.mxu0 %v338
  %v443 = vpop.f32.mrf.mxu0
  %v444 = vadd.f32 %v369, %v443
  %v445 = vpop.f32.mrf.mxu0
  %v446 = vadd.f32 %v369, %v445
  %447 = vmatmul.bf16.gmra.mxu0 %v339
  %v448 = vpop.f32.mrf.mxu0
  %v449 = vadd.f32 %v369, %v448
  %v450 = vpop.f32.mrf.mxu0
  %v451 = vadd.f32 %v369, %v450
  %452 = vmatmul.bf16.gmra.mxu0 %v340
  %v453 = vpop.f32.mrf.mxu0
  %v454 = vadd.f32 %v369, %v453
  %v455 = vpop.f32.mrf.mxu0
  %v456 = vadd.f32 %v369, %v455
  %457 = vmatmul.bf16.gmra.mxu0 %v341
  %v458 = vpop.f32.mrf.mxu0
  %v459 = vadd.f32 %v369, %v458
  %v460 = vpop.f32.mrf.mxu0
  %v461 = vadd.f32 %v369, %v460
  %462 = vmatmul.bf16.gmra.mxu0 %v342
  %v463 = vpop.f32.mrf.mxu0
  %v464 = vadd.f32 %v369, %v463
  %v465 = vpop.f32.mrf.mxu0
  %v466 = vadd.f32 %v369, %v465
  %467 = vmatmul.bf16.gmra.mxu0 %v343
  %v468 = vpop.f32.mrf.mxu0
  %v469 = vadd.f32 %v369, %v468
  %v470 = vpop.f32.mrf.mxu0
  %v471 = vadd.f32 %v369, %v470
  %472 = vmatmul.bf16.gmra.mxu0 %v344
  %v473 = vpop.f32.mrf.mxu0
  %v474 = vadd.f32 %v369, %v473
  %v475 = vpop.f32.mrf.mxu0
  %v476 = vadd.f32 %v369, %v475
  %477 = vmatmul.bf16.gmra.mxu0 %v345
  %v478 = vpop.f32.mrf.mxu0
  %v479 = vadd.f32 %v369, %v478
  %v480 = vpop.f32.mrf.mxu0
  %v481 = vadd.f32 %v369, %v480
  %482 = vmatmul.bf16.gmra.mxu0 %v346
  %v483 = vpop.f32.mrf.mxu0
  %v484 = vadd.f32 %v369, %v483
  %v485 = vpop.f32.mrf.mxu0
  %v486 = vadd.f32 %v369, %v485
  %487 = vmatmul.bf16.gmra.mxu0 %v347
  %v488 = vpop.f32.mrf.mxu0
  %v489 = vadd.f32 %v369, %v488
  %v490 = vpop.f32.mrf.mxu0
  %v491 = vadd.f32 %v369, %v490
  %492 = vmatmul.bf16.gmra.mxu0 %v348
  %v493 = vpop.f32.mrf.mxu0
  %v494 = vadd.f32 %v369, %v493
  %v495 = vpop.f32.mrf.mxu0
  %v496 = vadd.f32 %v369, %v495
  %497 = vmatmul.bf16.gmra.mxu0 %v349
  %v498 = vpop.f32.mrf.mxu0
  %v499 = vadd.f32 %v369, %v498
  %v500 = vpop.f32.mrf.mxu0
  %v501 = vadd.f32 %v369, %v500
  %502 = vmatmul.bf16.gmra.mxu0 %v350
  %v503 = vpop.f32.mrf.mxu0
  %v504 = vadd.f32 %v369, %v503
  %v505 = vpop.f32.mrf.mxu0
  %v506 = vadd.f32 %v369, %v505
  %507 = vdwg.mxu0
  %v508 = vmax.f32 %v429, 0.0
  %v509 = vmax.f32 %v431, 0.0
  %v510 = vmax.f32 %v434, 0.0
  %v511 = vmax.f32 %v436, 0.0
  %v512 = vmax.f32 %v439, 0.0
  %v513 = vmax.f32 %v441, 0.0
  %v514 = vmax.f32 %v444, 0.0
  %v515 = vmax.f32 %v446, 0.0
  %v516 = vmax.f32 %v449, 0.0
  %v517 = vmax.f32 %v451, 0.0
  %v518 = vmax.f32 %v454, 0.0
  %v519 = vmax.f32 %v456, 0.0
  %v520 = vmax.f32 %v459, 0.0
  %v521 = vmax.f32 %v461, 0.0
  %v522 = vmax.f32 %v464, 0.0
  %v523 = vmax.f32 %v466, 0.0
  %v524 = vmax.f32 %v469, 0.0
  %v525 = vmax.f32 %v471, 0.0
  %v526 = vmax.f32 %v474, 0.0
  %v527 = vmax.f32 %v476, 0.0
  %v528 = vmax.f32 %v479, 0.0
  %v529 = vmax.f32 %v481, 0.0
  %v530 = vmax.f32 %v484, 0.0
  %v531 = vmax.f32 %v486, 0.0
  %v532 = vmax.f32 %v489, 0.0
  %v533 = vmax.f32 %v491, 0.0
  %v534 = vmax.f32 %v494, 0.0
  %v535 = vmax.f32 %v496, 0.0
  %v536 = vmax.f32 %v499, 0.0
  %v537 = vmax.f32 %v501, 0.0
  %v538 = vmax.f32 %v504, 0.0
  %v539 = vmax.f32 %v506, 0.0
  %v540 = vpack.c.bf16 %v509, %v508
  %v541 = vpack.c.bf16 %v511, %v510
  %v542 = vpack.c.bf16 %v513, %v512
  %v543 = vpack.c.bf16 %v515, %v514
  %v544 = vpack.c.bf16 %v517, %v516
  %v545 = vpack.c.bf16 %v519, %v518
  %v546 = vpack.c.bf16 %v521, %v520
  %v547 = vpack.c.bf16 %v523, %v522
  %v548 = vpack.c.bf16 %v525, %v524
  %v549 = vpack.c.bf16 %v527, %v526
  %v550 = vpack.c.bf16 %v529, %v528
  %v551 = vpack.c.bf16 %v531, %v530
  %v552 = vpack.c.bf16 %v533, %v532
  %v553 = vpack.c.bf16 %v535, %v534
  %v554 = vpack.c.bf16 %v537, %v536
  %v555 = vpack.c.bf16 %v539, %v538
  %v556 = vld [vmem:[%s5] sm:$0xf]
  %v557 = vld [vmem:[%s5 + $0x4] sm:$0xf]
  %v558 = vld [vmem:[%s5 + $0x8] sm:$0xf]
  %v559 = vld [vmem:[%s5 + $0xc] sm:$0xf]
  %v560 = vld [vmem:[%s5 + $0x10] sm:$0xf]
  %v561 = vld [vmem:[%s5 + $0x14] sm:$0xf]
  %v562 = vld [vmem:[%s5 + $0x18] sm:$0xf]
  %v563 = vld [vmem:[%s5 + $0x1c] sm:$0xf]
  %v564 = vld [vmem:[%s5 + $0x20] sm:$0xf]
  %v565 = vld [vmem:[%s5 + $0x24] sm:$0xf]
  %v566 = vld [vmem:[%s5 + $0x28] sm:$0xf]
  %v567 = vld [vmem:[%s5 + $0x2c] sm:$0xf]
  %v568 = vld [vmem:[%s5 + $0x30] sm:$0xf]
  %v569 = vld [vmem:[%s5 + $0x34] sm:$0xf]
  %v570 = vld [vmem:[%s5 + $0x38] sm:$0xf]
  %v571 = vld [vmem:[%s5 + $0x3c] sm:$0xf]
  %v572 = vld [vmem:[%s6] sm:$0x1]
  %v574 = vperm.slane %v572, 0
  %v592 = vunpack.c.l.b16 %v556
  %v593 = vunpack.c.l.b16 %v557
  %v594 = vunpack.c.l.b16 %v558
  %v595 = vunpack.c.l.b16 %v559
  %v596 = vunpack.c.l.b16 %v560
  %v597 = vunpack.c.l.b16 %v561
  %v598 = vunpack.c.l.b16 %v562
  %v599 = vunpack.c.l.b16 %v563
  %v600 = vunpack.c.l.b16 %v564
  %v601 = vunpack.c.l.b16 %v565
  %v602 = vunpack.c.l.b16 %v566
  %v603 = vunpack.c.l.b16 %v567
  %v604 = vunpack.c.l.b16 %v568
  %v605 = vunpack.c.l.b16 %v569
  %v606 = vunpack.c.l.b16 %v570
  %v607 = vunpack.c.l.b16 %v571
  %v608 = vpack.c.b16 %v593, %v592
  %v609 = vpack.c.b16 %v595, %v594
  %v610 = vpack.c.b16 %v597, %v596
  %v611 = vpack.c.b16 %v599, %v598
  %v612 = vpack.c.b16 %v601, %v600
  %v613 = vpack.c.b16 %v603, %v602
  %v614 = vpack.c.b16 %v605, %v604
  %v615 = vpack.c.b16 %v607, %v606
  %624 = vmatpush.bf16.msra.mxu0 %v615
  %625 = vmatpush.bf16.msra.mxu0 %v614
  %626 = vmatpush.bf16.msra.mxu0 %v613
  %627 = vmatpush.bf16.msra.mxu0 %v612
  %628 = vmatpush.bf16.msra.mxu0 %v611
  %629 = vmatpush.bf16.msra.mxu0 %v610
  %630 = vmatpush.bf16.msra.mxu0 %v609
  %631 = vmatpush.bf16.msra.mxu0 %v608
  %632 = vmatmul.bf16.gmra.mxu0 %v540
  %v633 = vpop.f32.mrf.mxu0
  %v634 = vadd.f32 %v574, %v633
  %v635 = vpop.f32.mrf.mxu0
  %v636 = vadd.f32 %v574, %v635
  %637 = vmatmul.bf16.gmra.mxu0 %v541
  %v638 = vpop.f32.mrf.mxu0
  %v639 = vadd.f32 %v574, %v638
  %v640 = vpop.f32.mrf.mxu0
  %v641 = vadd.f32 %v574, %v640
  %642 = vmatmul.bf16.gmra.mxu0 %v542
  %v643 = vpop.f32.mrf.mxu0
  %v644 = vadd.f32 %v574, %v643
  %v645 = vpop.f32.mrf.mxu0
  %v646 = vadd.f32 %v574, %v645
  %647 = vmatmul.bf16.gmra.mxu0 %v543
  %v648 = vpop.f32.mrf.mxu0
  %v649 = vadd.f32 %v574, %v648
  %v650 = vpop.f32.mrf.mxu0
  %v651 = vadd.f32 %v574, %v650
  %652 = vmatmul.bf16.gmra.mxu0 %v544
  %v653 = vpop.f32.mrf.mxu0
  %v654 = vadd.f32 %v574, %v653
  %v655 = vpop.f32.mrf.mxu0
  %v656 = vadd.f32 %v574, %v655
  %657 = vmatmul.bf16.gmra.mxu0 %v545
  %v658 = vpop.f32.mrf.mxu0
  %v659 = vadd.f32 %v574, %v658
  %v660 = vpop.f32.mrf.mxu0
  %v661 = vadd.f32 %v574, %v660
  %662 = vmatmul.bf16.gmra.mxu0 %v546
  %v663 = vpop.f32.mrf.mxu0
  %v664 = vadd.f32 %v574, %v663
  %v665 = vpop.f32.mrf.mxu0
  %v666 = vadd.f32 %v574, %v665
  %667 = vmatmul.bf16.gmra.mxu0 %v547
  %v668 = vpop.f32.mrf.mxu0
  %v669 = vadd.f32 %v574, %v668
  %v670 = vpop.f32.mrf.mxu0
  %v671 = vadd.f32 %v574, %v670
  %672 = vmatmul.bf16.gmra.mxu0 %v548
  %v673 = vpop.f32.mrf.mxu0
  %v674 = vadd.f32 %v574, %v673
  %v675 = vpop.f32.mrf.mxu0
  %v676 = vadd.f32 %v574, %v675
  %677 = vmatmul.bf16.gmra.mxu0 %v549
  %v678 = vpop.f32.mrf.mxu0
  %v679 = vadd.f32 %v574, %v678
  %v680 = vpop.f32.mrf.mxu0
  %v681 = vadd.f32 %v574, %v680
  %682 = vmatmul.bf16.gmra.mxu0 %v550
  %v683 = vpop.f32.mrf.mxu0
  %v684 = vadd.f32 %v574, %v683
  %v685 = vpop.f32.mrf.mxu0
  %v686 = vadd.f32 %v574, %v685
  %687 = vmatmul.bf16.gmra.mxu0 %v551
  %v688 = vpop.f32.mrf.mxu0
  %v689 = vadd.f32 %v574, %v688
  %v690 = vpop.f32.mrf.mxu0
  %v691 = vadd.f32 %v574, %v690
  %692 = vmatmul.bf16.gmra.mxu0 %v552
  %v693 = vpop.f32.mrf.mxu0
  %v694 = vadd.f32 %v574, %v693
  %v695 = vpop.f32.mrf.mxu0
  %v696 = vadd.f32 %v574, %v695
  %697 = vmatmul.bf16.gmra.mxu0 %v553
  %v698 = vpop.f32.mrf.mxu0
  %v699 = vadd.f32 %v574, %v698
  %v700 = vpop.f32.mrf.mxu0
  %v701 = vadd.f32 %v574, %v700
  %702 = vmatmul.bf16.gmra.mxu0 %v554
  %v703 = vpop.f32.mrf.mxu0
  %v704 = vadd.f32 %v574, %v703
  %v705 = vpop.f32.mrf.mxu0
  %v706 = vadd.f32 %v574, %v705
  %707 = vmatmul.bf16.gmra.mxu0 %v555
  %v708 = vpop.f32.mrf.mxu0
  %v709 = vadd.f32 %v574, %v708
  %v710 = vpop.f32.mrf.mxu0
  %v711 = vadd.f32 %v574, %v710
  %712 = vdwg.mxu0
  %v713 = vmax.f32 %v634, 0.0
  %v714 = vmax.f32 %v636, 0.0
  %v715 = vmax.f32 %v639, 0.0
  %v716 = vmax.f32 %v641, 0.0
  %v717 = vmax.f32 %v644, 0.0
  %v718 = vmax.f32 %v646, 0.0
  %v719 = vmax.f32 %v649, 0.0
  %v720 = vmax.f32 %v651, 0.0
  %v721 = vmax.f32 %v654, 0.0
  %v722 = vmax.f32 %v656, 0.0
  %v723 = vmax.f32 %v659, 0.0
  %v724 = vmax.f32 %v661, 0.0
  %v725 = vmax.f32 %v664, 0.0
  %v726 = vmax.f32 %v666, 0.0
  %v727 = vmax.f32 %v669, 0.0
  %v728 = vmax.f32 %v671, 0.0
  %v729 = vmax.f32 %v674, 0.0
  %v730 = vmax.f32 %v676, 0.0
  %v731 = vmax.f32 %v679, 0.0
  %v732 = vmax.f32 %v681, 0.0
  %v733 = vmax.f32 %v684, 0.0
  %v734 = vmax.f32 %v686, 0.0
  %v735 = vmax.f32 %v689, 0.0
  %v736 = vmax.f32 %v691, 0.0
  %v737 = vmax.f32 %v694, 0.0
  %v738 = vmax.f32 %v696, 0.0
  %v739 = vmax.f32 %v699, 0.0
  %v740 = vmax.f32 %v701, 0.0
  %v741 = vmax.f32 %v704, 0.0
  %v742 = vmax.f32 %v706, 0.0
  %v743 = vmax.f32 %v709, 0.0
  %v744 = vmax.f32 %v711, 0.0
  %v745 = vpack.c.bf16 %v714, %v713
  %v746 = vpack.c.bf16 %v716, %v715
  %v747 = vpack.c.bf16 %v718, %v717
  %v748 = vpack.c.bf16 %v720, %v719
  %v749 = vpack.c.bf16 %v722, %v721
  %v750 = vpack.c.bf16 %v724, %v723
  %v751 = vpack.c.bf16 %v726, %v725
  %v752 = vpack.c.bf16 %v728, %v727
  %v753 = vpack.c.bf16 %v730, %v729
  %v754 = vpack.c.bf16 %v732, %v731
  %v755 = vpack.c.bf16 %v734, %v733
  %v756 = vpack.c.bf16 %v736, %v735
  %v757 = vpack.c.bf16 %v738, %v737
  %v758 = vpack.c.bf16 %v740, %v739
  %v759 = vpack.c.bf16 %v742, %v741
  %v760 = vpack.c.bf16 %v744, %v743
  %v761 = vld [vmem:[%s7] sm:$0xf]
  %v762 = vld [vmem:[%s7 + $0x4] sm:$0xf]
  %v763 = vld [vmem:[%s7 + $0x8] sm:$0xf]
  %v764 = vld [vmem:[%s7 + $0xc] sm:$0xf]
  %v765 = vld [vmem:[%s7 + $0x10] sm:$0xf]
  %v766 = vld [vmem:[%s7 + $0x14] sm:$0xf]
  %v767 = vld [vmem:[%s7 + $0x18] sm:$0xf]
  %v768 = vld [vmem:[%s7 + $0x1c] sm:$0xf]
  %v769 = vld [vmem:[%s7 + $0x20] sm:$0xf]
  %v770 = vld [vmem:[%s7 + $0x24] sm:$0xf]
  %v771 = vld [vmem:[%s7 + $0x28] sm:$0xf]
  %v772 = vld [vmem:[%s7 + $0x2c] sm:$0xf]
  %v773 = vld [vmem:[%s7 + $0x30] sm:$0xf]
  %v774 = vld [vmem:[%s7 + $0x34] sm:$0xf]
  %v775 = vld [vmem:[%s7 + $0x38] sm:$0xf]
  %v776 = vld [vmem:[%s7 + $0x3c] sm:$0xf]
  %v777 = vld [vmem:[%s8] sm:$0x1]
  %v779 = vperm.slane %v777, 0
  %v797 = vunpack.c.l.b16 %v761
  %v798 = vunpack.c.l.b16 %v762
  %v799 = vunpack.c.l.b16 %v763
  %v800 = vunpack.c.l.b16 %v764
  %v801 = vunpack.c.l.b16 %v765
  %v802 = vunpack.c.l.b16 %v766
  %v803 = vunpack.c.l.b16 %v767
  %v804 = vunpack.c.l.b16 %v768
  %v805 = vunpack.c.l.b16 %v769
  %v806 = vunpack.c.l.b16 %v770
  %v807 = vunpack.c.l.b16 %v771
  %v808 = vunpack.c.l.b16 %v772
  %v809 = vunpack.c.l.b16 %v773
  %v810 = vunpack.c.l.b16 %v774
  %v811 = vunpack.c.l.b16 %v775
  %v812 = vunpack.c.l.b16 %v776
  %v813 = vpack.c.b16 %v798, %v797
  %v814 = vpack.c.b16 %v800, %v799
  %v815 = vpack.c.b16 %v802, %v801
  %v816 = vpack.c.b16 %v804, %v803
  %v817 = vpack.c.b16 %v806, %v805
  %v818 = vpack.c.b16 %v808, %v807
  %v819 = vpack.c.b16 %v810, %v809
  %v820 = vpack.c.b16 %v812, %v811
  %829 = vmatpush.bf16.msra.mxu0 %v820
  %830 = vmatpush.bf16.msra.mxu0 %v819
  %831 = vmatpush.bf16.msra.mxu0 %v818
  %832 = vmatpush.bf16.msra.mxu0 %v817
  %833 = vmatpush.bf16.msra.mxu0 %v816
  %834 = vmatpush.bf16.msra.mxu0 %v815
  %835 = vmatpush.bf16.msra.mxu0 %v814
  %836 = vmatpush.bf16.msra.mxu0 %v813
  %837 = vmatmul.bf16.gmra.mxu0 %v745
  %v838 = vpop.f32.mrf.mxu0
  %v839 = vadd.f32 %v779, %v838
  %v840 = vpop.f32.mrf.mxu0
  %v841 = vadd.f32 %v779, %v840
  %842 = vmatmul.bf16.gmra.mxu0 %v746
  %v843 = vpop.f32.mrf.mxu0
  %v844 = vadd.f32 %v779, %v843
  %v845 = vpop.f32.mrf.mxu0
  %v846 = vadd.f32 %v779, %v845
  %847 = vmatmul.bf16.gmra.mxu0 %v747
  %v848 = vpop.f32.mrf.mxu0
  %v849 = vadd.f32 %v779, %v848
  %v850 = vpop.f32.mrf.mxu0
  %v851 = vadd.f32 %v779, %v850
  %852 = vmatmul.bf16.gmra.mxu0 %v748
  %v853 = vpop.f32.mrf.mxu0
  %v854 = vadd.f32 %v779, %v853
  %v855 = vpop.f32.mrf.mxu0
  %v856 = vadd.f32 %v779, %v855
  %857 = vmatmul.bf16.gmra.mxu0 %v749
  %v858 = vpop.f32.mrf.mxu0
  %v859 = vadd.f32 %v779, %v858
  %v860 = vpop.f32.mrf.mxu0
  %v861 = vadd.f32 %v779, %v860
  %862 = vmatmul.bf16.gmra.mxu0 %v750
  %v863 = vpop.f32.mrf.mxu0
  %v864 = vadd.f32 %v779, %v863
  %v865 = vpop.f32.mrf.mxu0
  %v866 = vadd.f32 %v779, %v865
  %867 = vmatmul.bf16.gmra.mxu0 %v751
  %v868 = vpop.f32.mrf.mxu0
  %v869 = vadd.f32 %v779, %v868
  %v870 = vpop.f32.mrf.mxu0
  %v871 = vadd.f32 %v779, %v870
  %872 = vmatmul.bf16.gmra.mxu0 %v752
  %v873 = vpop.f32.mrf.mxu0
  %v874 = vadd.f32 %v779, %v873
  %v875 = vpop.f32.mrf.mxu0
  %v876 = vadd.f32 %v779, %v875
  %877 = vmatmul.bf16.gmra.mxu0 %v753
  %v878 = vpop.f32.mrf.mxu0
  %v879 = vadd.f32 %v779, %v878
  %v880 = vpop.f32.mrf.mxu0
  %v881 = vadd.f32 %v779, %v880
  %882 = vmatmul.bf16.gmra.mxu0 %v754
  %v883 = vpop.f32.mrf.mxu0
  %v884 = vadd.f32 %v779, %v883
  %v885 = vpop.f32.mrf.mxu0
  %v886 = vadd.f32 %v779, %v885
  %887 = vmatmul.bf16.gmra.mxu0 %v755
  %v888 = vpop.f32.mrf.mxu0
  %v889 = vadd.f32 %v779, %v888
  %v890 = vpop.f32.mrf.mxu0
  %v891 = vadd.f32 %v779, %v890
  %892 = vmatmul.bf16.gmra.mxu0 %v756
  %v893 = vpop.f32.mrf.mxu0
  %v894 = vadd.f32 %v779, %v893
  %v895 = vpop.f32.mrf.mxu0
  %v896 = vadd.f32 %v779, %v895
  %897 = vmatmul.bf16.gmra.mxu0 %v757
  %v898 = vpop.f32.mrf.mxu0
  %v899 = vadd.f32 %v779, %v898
  %v900 = vpop.f32.mrf.mxu0
  %v901 = vadd.f32 %v779, %v900
  %902 = vmatmul.bf16.gmra.mxu0 %v758
  %v903 = vpop.f32.mrf.mxu0
  %v904 = vadd.f32 %v779, %v903
  %v905 = vpop.f32.mrf.mxu0
  %v906 = vadd.f32 %v779, %v905
  %907 = vmatmul.bf16.gmra.mxu0 %v759
  %v908 = vpop.f32.mrf.mxu0
  %v909 = vadd.f32 %v779, %v908
  %v910 = vpop.f32.mrf.mxu0
  %v911 = vadd.f32 %v779, %v910
  %912 = vmatmul.bf16.gmra.mxu0 %v760
  %v913 = vpop.f32.mrf.mxu0
  %v914 = vadd.f32 %v779, %v913
  %v915 = vpop.f32.mrf.mxu0
  %v916 = vadd.f32 %v779, %v915
  %917 = vdwg.mxu0
  %918 = vst [vmem:[%s9] sm:$0xff] %v839
  %919 = vst [vmem:[%s9 + $0x8] sm:$0xff] %v841
  %920 = vst [vmem:[%s9 + $0x10] sm:$0xff] %v844
  %921 = vst [vmem:[%s9 + $0x18] sm:$0xff] %v846
  %922 = vst [vmem:[%s9 + $0x20] sm:$0xff] %v849
  %923 = vst [vmem:[%s9 + $0x28] sm:$0xff] %v851
  %924 = vst [vmem:[%s9 + $0x30] sm:$0xff] %v854
  %925 = vst [vmem:[%s9 + $0x38] sm:$0xff] %v856
  %926 = vst [vmem:[%s9 + $0x40] sm:$0xff] %v859
  %927 = vst [vmem:[%s9 + $0x48] sm:$0xff] %v861
  %928 = vst [vmem:[%s9 + $0x50] sm:$0xff] %v864
  %929 = vst [vmem:[%s9 + $0x58] sm:$0xff] %v866
  %930 = vst [vmem:[%s9 + $0x60] sm:$0xff] %v869
  %931 = vst [vmem:[%s9 + $0x68] sm:$0xff] %v871
  %932 = vst [vmem:[%s9 + $0x70] sm:$0xff] %v874
  %933 = vst [vmem:[%s9 + $0x78] sm:$0xff] %v876
  %934 = vst [vmem:[%s9 + $0x80] sm:$0xff] %v879
  %935 = vst [vmem:[%s9 + $0x88] sm:$0xff] %v881
  %936 = vst [vmem:[%s9 + $0x90] sm:$0xff] %v884
  %937 = vst [vmem:[%s9 + $0x98] sm:$0xff] %v886
  %938 = vst [vmem:[%s9 + $0xa0] sm:$0xff] %v889
  %939 = vst [vmem:[%s9 + $0xa8] sm:$0xff] %v891
  %940 = vst [vmem:[%s9 + $0xb0] sm:$0xff] %v894
  %941 = vst [vmem:[%s9 + $0xb8] sm:$0xff] %v896
  %942 = vst [vmem:[%s9 + $0xc0] sm:$0xff] %v899
  %943 = vst [vmem:[%s9 + $0xc8] sm:$0xff] %v901
  %944 = vst [vmem:[%s9 + $0xd0] sm:$0xff] %v904
  %945 = vst [vmem:[%s9 + $0xd8] sm:$0xff] %v906
  %946 = vst [vmem:[%s9 + $0xe0] sm:$0xff] %v909
  %947 = vst [vmem:[%s9 + $0xe8] sm:$0xff] %v911
  %948 = vst [vmem:[%s9 + $0xf0] sm:$0xff] %v914
  %949 = vst [vmem:[%s9 + $0xf8] sm:$0xff] %v916
  // Predicated region
  $region38: #{dnn_forward.1} parent=0 // pred_check
    _
  $region39: #{dnn_forward.1} parent=0 // pred_check_branch
    %951 = sbr.rel (0) target = $region41
  $region40: #{dnn_forward.1} parent=0 // pred_region
    _
  $region41: #{dnn_forward.1} parent=0 // pred_fallthru
    _
  // Predicated region
  $region42: #{dnn_forward.1} parent=0 // pred_check
    _
  $region43: #{dnn_forward.1} parent=0 // pred_check_branch
    %953 = sbr.rel (0) target = $region45
  $region44: #{dnn_forward.1} parent=0 // pred_region
    _
  $region45: #{dnn_forward.1} parent=0 // pred_fallthru
    _

</llo_original>
